<compile_context>
chip_gen: v7x
topology: tpu7x:2x2x1
jax: 0.10.0
libtpu: 0.0.40
codegen_flags: <defaults>
</compile_context>

<pallas_src>
import functools

import jax
import jax.numpy as jnp
from jax import lax
from jax.experimental import pallas as pl
from jax.experimental.pallas import tpu as pltpu

TEMP = 0.07
TRANSFER_WEIGHT = 10.0
_EPS = 1e-8


def _dpn_kernel(logits_ref, tgt_ref, lab_ref, uk_ref, embeds_ref, protos_ref,
                pstats_ref, out_ref, *, n_uproto, k2_real, inv_temp, batch):
    f32 = jnp.float32

    # ---- per-row cross entropy (target logit picked via iota mask) ---------
    logits = logits_ref[...].astype(f32)                          # (TB, C)
    tb, c = logits.shape
    row_max = jnp.max(logits, axis=-1, keepdims=True)
    lse = row_max + jnp.log(jnp.sum(jnp.exp(logits - row_max),
                                    axis=-1, keepdims=True))      # (TB, 1)
    col = lax.broadcasted_iota(jnp.int32, (tb, c), 1)
    tgt_logit = jnp.sum(jnp.where(col == tgt_ref[...], logits, 0.0),
                        axis=-1, keepdims=True)
    ce = lse - tgt_logit                                          # (TB, 1)

    # ---- one MXU pass against the padded [u_proto | l_proto | 0] slab ------
    e_in = embeds_ref[...]                                        # (TB, D)
    p_in = protos_ref[...]                                        # (D, K2pad)
    dots = jnp.dot(e_in.astype(p_in.dtype), p_in,
                   preferred_element_type=f32)                    # (TB, K2pad)

    e = e_in.astype(f32)
    e_sq = jnp.sum(e * e, axis=-1, keepdims=True)                 # (TB, 1)
    inv_e = lax.rsqrt(jnp.maximum(e_sq, _EPS * _EPS))

    ps = pstats_ref[...]                                          # (8, K2pad) f32
    p_sq = ps[0:1, :]                                             # (1, K2pad)
    inv_p = ps[1:2, :]                                            # (1, K2pad)

    cos = dots * inv_e * inv_p                                    # (TB, K2pad)
    dist = jnp.sqrt(jnp.maximum(e_sq + p_sq - 2.0 * dots, 0.0))   # (TB, K2pad)

    k2p = dots.shape[-1]
    lane = lax.broadcasted_iota(jnp.int32, (tb, k2p), 1)
    is_u = lane < n_uproto                                        # unlabeled protos
    is_l = (lane >= n_uproto) & (lane < k2_real)                  # excludes padding

    # single bounded exp; softmax normalization fused via approx reciprocal
    ex = jnp.exp(cos * inv_temp)
    ex_u = jnp.where(is_u, ex, 0.0)
    ex_l = jnp.where(is_l, ex, 0.0)
    inv_du = pl.reciprocal(jnp.sum(ex_u, axis=-1, keepdims=True), approx=True)
    inv_dl = pl.reciprocal(jnp.sum(ex_l, axis=-1, keepdims=True), approx=True)
    spl = jnp.sum(dist * ex_u, axis=-1, keepdims=True) * inv_du          # (TB,1)
    tr = jnp.sum((1.0 - cos) * ex_l, axis=-1, keepdims=True) * inv_dl    # (TB,1)

    # ---- in-kernel masked partial sums --------------------------------------
    # Rows past `batch` (ragged tail tile) may contain garbage (even inf/NaN);
    # they are excluded with where-selects, never with multiplies, so NaNs in
    # those rows cannot leak into the sums.
    row = pl.program_id(0) * tb + lax.broadcasted_iota(jnp.int32, (tb, 1), 0)
    valid = row < batch
    lab_v = lab_ref[...]
    lab = (lab_v != 0) & valid
    unlab = (lab_v == 0) & valid
    ukm = (uk_ref[...] != 0) & valid
    ce_part = jnp.sum(jnp.where(lab, ce, 0.0), axis=0, keepdims=True)     # (1,1)
    spl_part = jnp.sum(jnp.where(unlab, spl, 0.0), axis=0, keepdims=True)
    tr_part = jnp.sum(jnp.where(ukm, tr, 0.0), axis=0, keepdims=True)

    # one (8,128) writeback block per tile: lane0=ce, lane1=spl, lane2=tr
    out_lane = lax.broadcasted_iota(jnp.int32, (8, 128), 1)
    out_ref[...] = (jnp.where(out_lane == 0, ce_part, 0.0)
                    + jnp.where(out_lane == 1, spl_part, 0.0)
                    + jnp.where(out_lane == 2, tr_part, 0.0))


def _vmem_limit_bytes():
    """Scoped-VMEM target per generation: bigger tiles on the 128 MiB v5e/v6e
    parts, conservative cap on the 64 MiB/TC v7x part so we still double-buffer."""
    try:
        info = pltpu.get_tpu_info()
        cap = int(getattr(info, "vmem_capacity_bytes", 64 * 1024 * 1024))
    except Exception:
        cap = 64 * 1024 * 1024
    return 64 * 1024 * 1024 if cap >= 100 * 1024 * 1024 else 40 * 1024 * 1024


def _pick_tile(batch, c, d, k2_pad, in_bytes, row_mult, vmem_limit, const_bytes):
    """Biggest batch-tile that fits the VMEM budget with double buffering plus
    the f32 intermediates, rounded to the dtype's sublane packing, while
    keeping >= 2 grid steps when B allows it (2 TensorCores on v7x)."""
    if batch <= row_mult:
        return batch
    # constant blocks (protos + pstats) are double-buffered by the pipeline;
    # leave a few MiB of slack for compiler-internal scratch.
    budget = max(vmem_limit - 2 * const_bytes - (4 << 20), 2 << 20)
    native = (c + d) * in_bytes + 3 * 4                  # double-buffered inputs
    interm = (2 * c + 2 * d + 4 * k2_pad + 16) * 4       # f32 temporaries
    per_row = 2 * native + interm
    tb = (budget // per_row) // row_mult * row_mult
    half = ((batch + 1) // 2 + row_mult - 1) // row_mult * row_mult
    return max(row_mult, min(tb, half, 1024))


def _dpn_partials(logits, tgt_i32, lab_i32, uk_i32, embeds, protos_t, pstats,
                  *, n_uproto, k2_real):
    B, C = logits.shape
    D, K2p = protos_t.shape

    itemsizes = (jnp.dtype(logits.dtype).itemsize, jnp.dtype(embeds.dtype).itemsize)
    row_mult = 8 * max(1, 4 // min(itemsizes))           # 8 f32, 16 bf16, 32 int8
    in_bytes = max(itemsizes)

    vmem_limit = _vmem_limit_bytes()
    const_bytes = D * K2p * jnp.dtype(protos_t.dtype).itemsize + 8 * K2p * 4
    TB = _pick_tile(B, C, D, K2p, in_bytes, row_mult, vmem_limit, const_bytes)
    grid = (pl.cdiv(B, TB),)

    kernel = functools.partial(_dpn_kernel, n_uproto=n_uproto, k2_real=k2_real,
                               inv_temp=1.0 / TEMP, batch=B)
    out = pl.pallas_call(
        kernel,
        out_shape=jax.ShapeDtypeStruct((grid[0] * 8, 128), jnp.float32),
        grid=grid,
        in_specs=[
            pl.BlockSpec((TB, C), lambda i: (i, 0)),    # logits tile
            pl.BlockSpec((TB, 1), lambda i: (i, 0)),    # targets (int32)
            pl.BlockSpec((TB, 1), lambda i: (i, 0)),    # label mask (int32)
            pl.BlockSpec((TB, 1), lambda i: (i, 0)),    # unlabeled-known mask
            pl.BlockSpec((TB, D), lambda i: (i, 0)),    # embeds tile
            pl.BlockSpec((D, K2p), lambda i: (0, 0)),   # protos (constant block)
            pl.BlockSpec((8, K2p), lambda i: (0, 0)),   # hoisted ||p||^2 / 1/||p||
        ],
        out_specs=pl.BlockSpec((8, 128), lambda i: (i, 0)),
        compiler_params=pltpu.CompilerParams(
            dimension_semantics=("parallel",),
            vmem_limit_bytes=vmem_limit,
        ),
    )(logits, tgt_i32, lab_i32, uk_i32, embeds, protos_t, pstats)
    return out.reshape(grid[0], 8, 128)[:, 0, :3].sum(axis=0)    # (3,)


@jax.jit
def dpn_loss(logits, embeds, targets, label_mask, uk_mask, l_proto, u_proto):
    """Matches DPNLoss.forward (temp=0.07, transfer_weight=10)."""
    if l_proto.shape[0] == 0 or u_proto.shape[0] == 0:
        raise ValueError("DPNLoss needs non-empty labeled and unlabeled prototypes")
    B = logits.shape[0]
    D = embeds.shape[1]

    # ---- hoisted prototype-side work (done once, outside the grid loop) ----
    protos = jnp.concatenate([u_proto, l_proto], axis=0).astype(jnp.float32)  # (2K, D)
    k2_real = protos.shape[0]
    k2_pad = ((k2_real + 127) // 128) * 128
    p_sq = jnp.sum(protos * protos, axis=1)                       # (2K,)
    inv_p = lax.rsqrt(jnp.maximum(p_sq, _EPS * _EPS))
    pstats = jnp.zeros((8, k2_pad), jnp.float32)
    pstats = pstats.at[0, :k2_real].set(p_sq).at[1, :k2_real].set(inv_p)

    # MXU operand dtype: bf16 when f32 inputs and the matmul is big enough to
    # matter; small-D cases stay f32 for accuracy.
    mm_dtype = (jnp.bfloat16
                if embeds.dtype == jnp.float32 and D >= 256 else embeds.dtype)
    protos_t = jnp.pad(protos.astype(mm_dtype).T,
                       ((0, 0), (0, k2_pad - k2_real)))           # (D, K2pad)

    tgt_i32 = targets.reshape(B, 1).astype(jnp.int32)
    lab_i32 = label_mask.reshape(B, 1).astype(jnp.int32)
    uk_i32 = uk_mask.reshape(B, 1).astype(jnp.int32)

    sums = _dpn_partials(logits, tgt_i32, lab_i32, uk_i32, embeds, protos_t,
                         pstats, n_uproto=u_proto.shape[0], k2_real=k2_real)
    ce_sum, spl_sum, tr_sum = sums[0], sums[1], sums[2]

    lab_f = label_mask.astype(jnp.float32)
    uk_f = uk_mask.astype(jnp.float32)
    n_lab = jnp.sum(lab_f)
    n_unlab = jnp.sum(1.0 - lab_f)
    n_uk = jnp.sum(uk_f)

    # k_loss = CE averaged over labeled rows (0 if none labeled)
    k_loss = jnp.where(n_lab > 0, ce_sum / jnp.maximum(n_lab, 1.0), 0.0)
    # spl loss averaged over unlabeled rows
    spl_loss = spl_sum / jnp.maximum(n_unlab, 1.0)
    # transfer loss averaged over unlabeled-known rows (0 if none)
    tr_loss = jnp.where(n_uk > 0,
                        TRANSFER_WEIGHT * tr_sum / jnp.maximum(n_uk, 1.0), 0.0)
    # transfer term only contributes inside the "(~label_mask).sum() > 0" branch
    n_loss = jnp.where(n_unlab > 0, spl_loss + tr_loss, 0.0)
    return n_loss + k_loss


def _ref_loss(logits, embeds, targets, label_mask, uk_mask, l_proto, u_proto):
    """Pure-JAX reference of DPNLoss.forward for a sanity check."""
    logits = logits.astype(jnp.float32)
    embeds = embeds.astype(jnp.float32)
    l_proto = l_proto.astype(jnp.float32)
    u_proto = u_proto.astype(jnp.float32)

    def cos_sim(e, p):
        en = jnp.maximum(jnp.linalg.norm(e, axis=-1, keepdims=True), _EPS)
        pn = jnp.maximum(jnp.linalg.norm(p, axis=-1, keepdims=True), _EPS)
        return (e / en) @ (p / pn).T

    lse = jax.scipy.special.logsumexp(logits, axis=-1)
    tgt = jnp.take_along_axis(logits, targets[:, None], axis=-1)[:, 0]
    ce = lse - tgt

    sim_u = cos_sim(embeds, u_proto)
    w_u = jax.nn.softmax(sim_u / TEMP, axis=-1)
    dist = jnp.sqrt(jnp.sum((embeds[:, None, :] - u_proto[None, :, :]) ** 2, -1))
    spl = jnp.sum(dist * w_u, axis=-1)

    sim_l = cos_sim(embeds, l_proto)
    w_l = jax.nn.softmax(sim_l / TEMP, axis=-1)
    tr = jnp.sum((1.0 - sim_l) * w_l, axis=-1)

    lab = label_mask.astype(jnp.float32)
    unlab = 1.0 - lab
    uk = uk_mask.astype(jnp.float32)
    n_lab, n_unlab, n_uk = lab.sum(), unlab.sum(), uk.sum()
    k_loss = jnp.where(n_lab > 0, (ce * lab).sum() / jnp.maximum(n_lab, 1.0), 0.0)
    spl_loss = (spl * unlab).sum() / jnp.maximum(n_unlab, 1.0)
    tr_loss = jnp.where(
        n_uk > 0, TRANSFER_WEIGHT * (tr * uk).sum() / jnp.maximum(n_uk, 1.0), 0.0)
    return jnp.where(n_unlab > 0, spl_loss + tr_loss, 0.0) + k_loss


if __name__ == "__main__":
    key = jax.random.PRNGKey(0)
    B, C, D, K = 8, 6, 32, 4
    k0, k1, k2, k3, k4 = jax.random.split(key, 5)

    logits = jax.random.normal(k0, (B, C), jnp.float32)
    embeds = jax.random.normal(k1, (B, D), jnp.float32)
    targets = jax.random.randint(k2, (B,), 0, C)
    label_mask = jnp.array([True, True, False, False, True, False, False, False])
    uk_mask = jnp.array([False, False, True, False, False, True, False, False])
    l_proto = jax.random.normal(k3, (K, D), jnp.float32)
    u_proto = jax.random.normal(k4, (K, D), jnp.float32)

    loss = dpn_loss(logits, embeds, targets, label_mask, uk_mask, l_proto, u_proto)
    jax.block_until_ready(loss)
    ref = _ref_loss(logits, embeds, targets, label_mask, uk_mask, l_proto, u_proto)
    if not bool(jnp.allclose(loss, ref, rtol=1e-2, atol=1e-2)):
        raise SystemExit(f"MISMATCH kernel={float(loss)} ref={float(ref)}")

    # second case: batch not a multiple of the tile -> multi-step grid with a
    # ragged tail tile (exercises the in-kernel valid-row masking).
    B2 = 20
    j0, j1, j2, j3 = jax.random.split(jax.random.PRNGKey(1), 4)
    logits2 = jax.random.normal(j0, (B2, C), jnp.float32)
    embeds2 = jax.random.normal(j1, (B2, D), jnp.float32)
    targets2 = jax.random.randint(j2, (B2,), 0, C)
    label_mask2 = jax.random.bernoulli(j3, 0.4, (B2,))
    uk_mask2 = jnp.logical_and(
        ~label_mask2, jax.random.bernoulli(jax.random.PRNGKey(2), 0.5, (B2,)))
    loss2 = dpn_loss(logits2, embeds2, targets2, label_mask2, uk_mask2,
                     l_proto, u_proto)
    jax.block_until_ready(loss2)
    ref2 = _ref_loss(logits2, embeds2, targets2, label_mask2, uk_mask2,
                     l_proto, u_proto)
    if not bool(jnp.allclose(loss2, ref2, rtol=1e-2, atol=1e-2)):
        raise SystemExit(f"MISMATCH2 kernel={float(loss2)} ref={float(ref2)}")

    print("KERNEL_OK")
</pallas_src>

<mosaic_0001>
module attributes {stable_mosaic.version = 11 : i64} {
  func.func @_dpn_kernel(%arg0: i32, %arg1: memref<8x6xf32, #tpu.memory_space<vmem>>, %arg2: memref<8x1xi32, #tpu.memory_space<vmem>>, %arg3: memref<8x1xi32, #tpu.memory_space<vmem>>, %arg4: memref<8x1xi32, #tpu.memory_space<vmem>>, %arg5: memref<8x32xf32, #tpu.memory_space<vmem>>, %arg6: memref<32x128xf32, #tpu.memory_space<vmem>>, %arg7: memref<8x128xf32, #tpu.memory_space<vmem>>, %arg8: memref<8x128xf32, #tpu.memory_space<vmem>>) attributes {dimension_semantics = [#tpu.dimension_semantics<parallel>], iteration_bounds = array<i64: 1>, scalar_prefetch = 0 : i64, scratch_operands = 0 : i64, tpu.core_type = #tpu.core_type<tc>, window_params = [{transform_indices = @transform_0, window_bounds = array<i64: 8, 6>}, {transform_indices = @transform_1, window_bounds = array<i64: 8, 1>}, {transform_indices = @transform_2, window_bounds = array<i64: 8, 1>}, {transform_indices = @transform_3, window_bounds = array<i64: 8, 1>}, {transform_indices = @transform_4, window_bounds = array<i64: 8, 32>}, {pipeline_mode = #tpu.pipeline_mode<synchronous>, transform_indices = @transform_5, window_bounds = array<i64: 32, 128>}, {pipeline_mode = #tpu.pipeline_mode<synchronous>, transform_indices = @transform_6, window_bounds = array<i64: 8, 128>}, {transform_indices = @transform_7, window_bounds = array<i64: 8, 128>}]} {
    %c0 = arith.constant 0 : index
    %c0_0 = arith.constant 0 : index
    %0 = vector.load %arg1[%c0, %c0_0] : memref<8x6xf32, #tpu.memory_space<vmem>>, vector<8x6xf32>
    %cst = arith.constant dense<0xFF800000> : vector<8xf32>
    %1 = vector.multi_reduction <maximumf>, %0, %cst [1] : vector<8x6xf32> to vector<8xf32>
    %2 = vector.shape_cast %1 : vector<8xf32> to vector<8x1xf32>
    %3 = vector.broadcast %2 : vector<8x1xf32> to vector<8x6xf32>
    %4 = arith.subf %0, %3 : vector<8x6xf32>
    %5 = math.exp %4 : vector<8x6xf32>
    %cst_1 = arith.constant dense<0.000000e+00> : vector<8xf32>
    %6 = vector.multi_reduction <add>, %5, %cst_1 [1] : vector<8x6xf32> to vector<8xf32>
    %7 = vector.shape_cast %6 : vector<8xf32> to vector<8x1xf32>
    %8 = math.log %7 : vector<8x1xf32>
    %9 = arith.addf %2, %8 : vector<8x1xf32>
    %10 = tpu.iota {dimensions = array<i32: 1>} : vector<8x6xi32>
    %c0_2 = arith.constant 0 : index
    %c0_3 = arith.constant 0 : index
    %11 = vector.load %arg2[%c0_2, %c0_3] : memref<8x1xi32, #tpu.memory_space<vmem>>, vector<8x1xi32>
    %12 = vector.broadcast %11 : vector<8x1xi32> to vector<8x6xi32>
    %13 = arith.cmpi eq, %10, %12 : vector<8x6xi32>
    %cst_4 = arith.constant 0.000000e+00 : f32
    %14 = vector.broadcast %cst_4 : f32 to vector<8x6xf32>
    %15 = arith.select %13, %0, %14 : vector<8x6xi1>, vector<8x6xf32>
    %cst_5 = arith.constant dense<0.000000e+00> : vector<8xf32>
    %16 = vector.multi_reduction <add>, %15, %cst_5 [1] : vector<8x6xf32> to vector<8xf32>
    %17 = vector.shape_cast %16 : vector<8xf32> to vector<8x1xf32>
    %18 = arith.subf %9, %17 : vector<8x1xf32>
    %c0_6 = arith.constant 0 : index
    %c0_7 = arith.constant 0 : index
    %19 = vector.load %arg5[%c0_6, %c0_7] : memref<8x32xf32, #tpu.memory_space<vmem>>, vector<8x32xf32>
    %c0_8 = arith.constant 0 : index
    %c0_9 = arith.constant 0 : index
    %20 = vector.load %arg6[%c0_8, %c0_9] : memref<32x128xf32, #tpu.memory_space<vmem>>, vector<32x128xf32>
    %cst_10 = arith.constant dense<0.000000e+00> : vector<8x128xf32>
    %21 = tpu.matmul %19, %20, %cst_10 {dimension_numbers = #tpu.dot_dimension_numbers<[1], [0], [0], [1], [0, 0, 1, 1], [], []>} : vector<8x32xf32>, vector<32x128xf32>, vector<8x128xf32> -> vector<8x128xf32>
    %22 = arith.mulf %19, %19 : vector<8x32xf32>
    %cst_11 = arith.constant dense<0.000000e+00> : vector<8xf32>
    %23 = vector.multi_reduction <add>, %22, %cst_11 [1] : vector<8x32xf32> to vector<8xf32>
    %24 = vector.shape_cast %23 : vector<8xf32> to vector<8x1xf32>
    %cst_12 = arith.constant 1.000000e-16 : f32
    %25 = vector.broadcast %cst_12 : f32 to vector<8x1xf32>
    %26 = arith.maximumf %24, %25 : vector<8x1xf32>
    %27 = math.rsqrt %26 : vector<8x1xf32>
    %c0_13 = arith.constant 0 : index
    %c0_14 = arith.constant 0 : index
    %28 = vector.load %arg7[%c0_13, %c0_14] : memref<8x128xf32, #tpu.memory_space<vmem>>, vector<8x128xf32>
    %29 = vector.extract_strided_slice %28 {offsets = [0, 0], sizes = [1, 128], strides = [1, 1]} : vector<8x128xf32> to vector<1x128xf32>
    %30 = vector.extract_strided_slice %28 {offsets = [1, 0], sizes = [1, 128], strides = [1, 1]} : vector<8x128xf32> to vector<1x128xf32>
    %31 = vector.broadcast %27 : vector<8x1xf32> to vector<8x128xf32>
    %32 = arith.mulf %21, %31 : vector<8x128xf32>
    %33 = vector.broadcast %30 : vector<1x128xf32> to vector<8x128xf32>
    %34 = arith.mulf %32, %33 : vector<8x128xf32>
    %35 = vector.broadcast %24 : vector<8x1xf32> to vector<8x128xf32>
    %36 = vector.broadcast %29 : vector<1x128xf32> to vector<8x128xf32>
    %37 = arith.addf %35, %36 : vector<8x128xf32>
    %cst_15 = arith.constant 2.000000e+00 : f32
    %38 = vector.broadcast %cst_15 : f32 to vector<8x128xf32>
    %39 = arith.mulf %38, %21 : vector<8x128xf32>
    %40 = arith.subf %37, %39 : vector<8x128xf32>
    %cst_16 = arith.constant 0.000000e+00 : f32
    %41 = vector.broadcast %cst_16 : f32 to vector<8x128xf32>
    %42 = arith.maximumf %40, %41 : vector<8x128xf32>
    %43 = math.sqrt %42 : vector<8x128xf32>
    %44 = tpu.iota {dimensions = array<i32: 1>} : vector<8x128xi32>
    %c4_i32 = arith.constant 4 : i32
    %45 = vector.broadcast %c4_i32 : i32 to vector<8x128xi32>
    %46 = arith.cmpi slt, %44, %45 : vector<8x128xi32>
    %c4_i32_17 = arith.constant 4 : i32
    %47 = vector.broadcast %c4_i32_17 : i32 to vector<8x128xi32>
    %48 = arith.cmpi sge, %44, %47 : vector<8x128xi32>
    %c8_i32 = arith.constant 8 : i32
    %49 = vector.broadcast %c8_i32 : i32 to vector<8x128xi32>
    %50 = arith.cmpi slt, %44, %49 : vector<8x128xi32>
    %51 = arith.andi %48, %50 : vector<8x128xi1>
    %cst_18 = arith.constant 14.2857141 : f32
    %52 = vector.broadcast %cst_18 : f32 to vector<8x128xf32>
    %53 = arith.mulf %34, %52 : vector<8x128xf32>
    %54 = math.exp %53 : vector<8x128xf32>
    %cst_19 = arith.constant 0.000000e+00 : f32
    %55 = vector.broadcast %cst_19 : f32 to vector<8x128xf32>
    %56 = arith.select %46, %54, %55 : vector<8x128xi1>, vector<8x128xf32>
    %cst_20 = arith.constant 0.000000e+00 : f32
    %57 = vector.broadcast %cst_20 : f32 to vector<8x128xf32>
    %58 = arith.select %51, %54, %57 : vector<8x128xi1>, vector<8x128xf32>
    %cst_21 = arith.constant dense<0.000000e+00> : vector<8xf32>
    %59 = vector.multi_reduction <add>, %56, %cst_21 [1] : vector<8x128xf32> to vector<8xf32>
    %60 = vector.shape_cast %59 : vector<8xf32> to vector<8x1xf32>
    %61 = tpu.reciprocal %60 {approx = true} : vector<8x1xf32> -> vector<8x1xf32>
    %cst_22 = arith.constant dense<0.000000e+00> : vector<8xf32>
    %62 = vector.multi_reduction <add>, %58, %cst_22 [1] : vector<8x128xf32> to vector<8xf32>
    %63 = vector.shape_cast %62 : vector<8xf32> to vector<8x1xf32>
    %64 = tpu.reciprocal %63 {approx = true} : vector<8x1xf32> -> vector<8x1xf32>
    %65 = arith.mulf %43, %56 : vector<8x128xf32>
    %cst_23 = arith.constant dense<0.000000e+00> : vector<8xf32>
    %66 = vector.multi_reduction <add>, %65, %cst_23 [1] : vector<8x128xf32> to vector<8xf32>
    %67 = vector.shape_cast %66 : vector<8xf32> to vector<8x1xf32>
    %68 = arith.mulf %67, %61 : vector<8x1xf32>
    %cst_24 = arith.constant 1.000000e+00 : f32
    %69 = vector.broadcast %cst_24 : f32 to vector<8x128xf32>
    %70 = arith.subf %69, %34 : vector<8x128xf32>
    %71 = arith.mulf %70, %58 : vector<8x128xf32>
    %cst_25 = arith.constant dense<0.000000e+00> : vector<8xf32>
    %72 = vector.multi_reduction <add>, %71, %cst_25 [1] : vector<8x128xf32> to vector<8xf32>
    %73 = vector.shape_cast %72 : vector<8xf32> to vector<8x1xf32>
    %74 = arith.mulf %73, %64 : vector<8x1xf32>
    %c8_i32_26 = arith.constant 8 : i32
    %75 = arith.muli %arg0, %c8_i32_26 : i32
    %76 = tpu.iota {dimensions = array<i32: 0>} : vector<8x1xi32>
    %77 = vector.broadcast %75 : i32 to vector<8x1xi32>
    %78 = arith.addi %77, %76 : vector<8x1xi32>
    %c8_i32_27 = arith.constant 8 : i32
    %79 = vector.broadcast %c8_i32_27 : i32 to vector<8x1xi32>
    %80 = arith.cmpi slt, %78, %79 : vector<8x1xi32>
    %c0_28 = arith.constant 0 : index
    %c0_29 = arith.constant 0 : index
    %81 = vector.load %arg3[%c0_28, %c0_29] : memref<8x1xi32, #tpu.memory_space<vmem>>, vector<8x1xi32>
    %c0_i32 = arith.constant 0 : i32
    %82 = vector.broadcast %c0_i32 : i32 to vector<8x1xi32>
    %83 = arith.cmpi ne, %81, %82 : vector<8x1xi32>
    %84 = arith.andi %83, %80 : vector<8x1xi1>
    %c0_i32_30 = arith.constant 0 : i32
    %85 = vector.broadcast %c0_i32_30 : i32 to vector<8x1xi32>
    %86 = arith.cmpi eq, %81, %85 : vector<8x1xi32>
    %87 = arith.andi %86, %80 : vector<8x1xi1>
    %c0_31 = arith.constant 0 : index
    %c0_32 = arith.constant 0 : index
    %88 = vector.load %arg4[%c0_31, %c0_32] : memref<8x1xi32, #tpu.memory_space<vmem>>, vector<8x1xi32>
    %c0_i32_33 = arith.constant 0 : i32
    %89 = vector.broadcast %c0_i32_33 : i32 to vector<8x1xi32>
    %90 = arith.cmpi ne, %88, %89 : vector<8x1xi32>
    %91 = arith.andi %90, %80 : vector<8x1xi1>
    %cst_34 = arith.constant 0.000000e+00 : f32
    %92 = vector.broadcast %cst_34 : f32 to vector<8x1xf32>
    %93 = arith.select %84, %18, %92 : vector<8x1xi1>, vector<8x1xf32>
    %cst_35 = arith.constant dense<0.000000e+00> : vector<1xf32>
    %94 = vector.multi_reduction <add>, %93, %cst_35 [0] : vector<8x1xf32> to vector<1xf32>
    %95 = vector.shape_cast %94 : vector<1xf32> to vector<1x1xf32>
    %cst_36 = arith.constant 0.000000e+00 : f32
    %96 = vector.broadcast %cst_36 : f32 to vector<8x1xf32>
    %97 = arith.select %87, %68, %96 : vector<8x1xi1>, vector<8x1xf32>
    %cst_37 = arith.constant dense<0.000000e+00> : vector<1xf32>
    %98 = vector.multi_reduction <add>, %97, %cst_37 [0] : vector<8x1xf32> to vector<1xf32>
    %99 = vector.shape_cast %98 : vector<1xf32> to vector<1x1xf32>
    %cst_38 = arith.constant 0.000000e+00 : f32
    %100 = vector.broadcast %cst_38 : f32 to vector<8x1xf32>
    %101 = arith.select %91, %74, %100 : vector<8x1xi1>, vector<8x1xf32>
    %cst_39 = arith.constant dense<0.000000e+00> : vector<1xf32>
    %102 = vector.multi_reduction <add>, %101, %cst_39 [0] : vector<8x1xf32> to vector<1xf32>
    %103 = vector.shape_cast %102 : vector<1xf32> to vector<1x1xf32>
    %104 = tpu.iota {dimensions = array<i32: 1>} : vector<8x128xi32>
    %c0_i32_40 = arith.constant 0 : i32
    %105 = vector.broadcast %c0_i32_40 : i32 to vector<8x128xi32>
    %106 = arith.cmpi eq, %104, %105 : vector<8x128xi32>
    %cst_41 = arith.constant 0.000000e+00 : f32
    %107 = vector.shape_cast %95 : vector<1x1xf32> to vector<1x1xf32>
    %108 = vector.broadcast %107 : vector<1x1xf32> to vector<8x128xf32>
    %109 = vector.broadcast %cst_41 : f32 to vector<8x128xf32>
    %110 = arith.select %106, %108, %109 : vector<8x128xi1>, vector<8x128xf32>
    %c1_i32 = arith.constant 1 : i32
    %111 = vector.broadcast %c1_i32 : i32 to vector<8x128xi32>
    %112 = arith.cmpi eq, %104, %111 : vector<8x128xi32>
    %cst_42 = arith.constant 0.000000e+00 : f32
    %113 = vector.shape_cast %99 : vector<1x1xf32> to vector<1x1xf32>
    %114 = vector.broadcast %113 : vector<1x1xf32> to vector<8x128xf32>
    %115 = vector.broadcast %cst_42 : f32 to vector<8x128xf32>
    %116 = arith.select %112, %114, %115 : vector<8x128xi1>, vector<8x128xf32>
    %117 = arith.addf %110, %116 : vector<8x128xf32>
    %c2_i32 = arith.constant 2 : i32
    %118 = vector.broadcast %c2_i32 : i32 to vector<8x128xi32>
    %119 = arith.cmpi eq, %104, %118 : vector<8x128xi32>
    %cst_43 = arith.constant 0.000000e+00 : f32
    %120 = vector.shape_cast %103 : vector<1x1xf32> to vector<1x1xf32>
    %121 = vector.broadcast %120 : vector<1x1xf32> to vector<8x128xf32>
    %122 = vector.broadcast %cst_43 : f32 to vector<8x128xf32>
    %123 = arith.select %119, %121, %122 : vector<8x128xi1>, vector<8x128xf32>
    %124 = arith.addf %117, %123 : vector<8x128xf32>
    %c0_44 = arith.constant 0 : index
    %c0_45 = arith.constant 0 : index
    %125 = vector.load %arg8[%c0_44, %c0_45] : memref<8x128xf32, #tpu.memory_space<vmem>>, vector<8x128xf32>
    tpu.vector_store %arg8[%c0_44, %c0_45], %124 {strides = array<i32>} : memref<8x128xf32, #tpu.memory_space<vmem>>, vector<8x128xf32>,
    return
  }
  func.func @transform_0(%arg0: i32) -> (i32, i32) {
    %c0_i32 = arith.constant 0 : i32
    %c0_i32_0 = arith.constant 0 : i32
    return %arg0, %c0_i32 : i32, i32
  }
  func.func @transform_1(%arg0: i32) -> (i32, i32) {
    %c0_i32 = arith.constant 0 : i32
    %c0_i32_0 = arith.constant 0 : i32
    return %arg0, %c0_i32 : i32, i32
  }
  func.func @transform_2(%arg0: i32) -> (i32, i32) {
    %c0_i32 = arith.constant 0 : i32
    %c0_i32_0 = arith.constant 0 : i32
    return %arg0, %c0_i32 : i32, i32
  }
  func.func @transform_3(%arg0: i32) -> (i32, i32) {
    %c0_i32 = arith.constant 0 : i32
    %c0_i32_0 = arith.constant 0 : i32
    return %arg0, %c0_i32 : i32, i32
  }
  func.func @transform_4(%arg0: i32) -> (i32, i32) {
    %c0_i32 = arith.constant 0 : i32
    %c0_i32_0 = arith.constant 0 : i32
    return %arg0, %c0_i32 : i32, i32
  }
  func.func @transform_5(%arg0: i32) -> (i32, i32) {
    %c0_i32 = arith.constant 0 : i32
    %c0_i32_0 = arith.constant 0 : i32
    %c0_i32_1 = arith.constant 0 : i32
    return %c0_i32, %c0_i32_0 : i32, i32
  }
  func.func @transform_6(%arg0: i32) -> (i32, i32) {
    %c0_i32 = arith.constant 0 : i32
    %c0_i32_0 = arith.constant 0 : i32
    %c0_i32_1 = arith.constant 0 : i32
    return %c0_i32, %c0_i32_0 : i32, i32
  }
  func.func @transform_7(%arg0: i32) -> (i32, i32) {
    %c0_i32 = arith.constant 0 : i32
    %c0_i32_0 = arith.constant 0 : i32
    return %arg0, %c0_i32 : i32, i32
  }
}

</mosaic_0001>

<llo_original>
// kernel: dpn_loss.1
$region0: #{dpn_loss.1}
  #allocation0 [shape = 'u32[]', space=smem, size = 0x4, offset = 0x4, fixed_abs, tag = 'smem constant byte address 0x4 - core index']
  #allocation1 [shape = 'u32[144,128]{1,0:T(1,128)}', space=vmem, size = 0x12000, scoped, tag = 'internal scratch']
  %s0 = inlined_call_operand.vmem [shape: f32[8,6], index: 0, kind: input, shape index: {}]
  %s1 = inlined_call_operand.vmem [shape: s32[8,1], index: 1, kind: input, shape index: {}]
  %s2 = inlined_call_operand.vmem [shape: s32[8,1], index: 2, kind: input, shape index: {}]
  %s3 = inlined_call_operand.vmem [shape: s32[8,1], index: 3, kind: input, shape index: {}]
  %s4 = inlined_call_operand.vmem [shape: f32[8,32], index: 4, kind: input, shape index: {}]
  %s5 = inlined_call_operand.vmem [shape: f32[32,128], index: 5, kind: input, shape index: {}]
  %s6 = inlined_call_operand.vmem [shape: f32[8,128], index: 6, kind: input, shape index: {}]
  %s7 = inlined_call_operand.vmem [shape: f32[8,128], index: 7, kind: output, shape index: {}]
  %s8 = sld [smem:[#allocation0]]
  $region38: #{dpn_loss.1} parent=0
    _
  %s10 = ssub.s32 1, %s8
  %s11 = scalar_select 0, %s10, %s8
  // Predicated region
  $region2: #{dpn_loss.1} parent=0 // pred_check
    _
  $region3: #{dpn_loss.1} parent=0 // pred_check_branch
    %13 = sbr.rel (0) target = $region5
  $region4: #{dpn_loss.1} parent=0 // pred_region
    _
  $region5: #{dpn_loss.1} parent=0 // pred_fallthru
    _
  // Predicated region
  $region6: #{dpn_loss.1} parent=0 // pred_check
    _
  $region7: #{dpn_loss.1} parent=0 // pred_check_branch
    %15 = sbr.rel (0) target = $region9
  $region8: #{dpn_loss.1} parent=0 // pred_region
    _
  $region9: #{dpn_loss.1} parent=0 // pred_fallthru
    _
  // Predicated region
  $region10: #{dpn_loss.1} parent=0 // pred_check
    _
  $region11: #{dpn_loss.1} parent=0 // pred_check_branch
    %17 = sbr.rel (0) target = $region13
  $region12: #{dpn_loss.1} parent=0 // pred_region
    _
  $region13: #{dpn_loss.1} parent=0 // pred_fallthru
    _
  // Predicated region
  $region14: #{dpn_loss.1} parent=0 // pred_check
    _
  $region15: #{dpn_loss.1} parent=0 // pred_check_branch
    %19 = sbr.rel (0) target = $region17
  $region16: #{dpn_loss.1} parent=0 // pred_region
    _
  $region17: #{dpn_loss.1} parent=0 // pred_fallthru
    _
  // Predicated region
  $region18: #{dpn_loss.1} parent=0 // pred_check
    _
  $region19: #{dpn_loss.1} parent=0 // pred_check_branch
    %21 = sbr.rel (0) target = $region21
  $region20: #{dpn_loss.1} parent=0 // pred_region
    _
  $region21: #{dpn_loss.1} parent=0 // pred_fallthru
    _
  // Predicated region
  $region22: #{dpn_loss.1} parent=0 // pred_check
    _
  $region23: #{dpn_loss.1} parent=0 // pred_check_branch
    %23 = sbr.rel (0) target = $region25
  $region24: #{dpn_loss.1} parent=0 // pred_region
    _
  $region25: #{dpn_loss.1} parent=0 // pred_fallthru
    _
  // Predicated region
  $region26: #{dpn_loss.1} parent=0 // pred_check
    _
  $region27: #{dpn_loss.1} parent=0 // pred_check_branch
    %25 = sbr.rel (0) target = $region29
  $region28: #{dpn_loss.1} parent=0 // pred_region
    _
  $region29: #{dpn_loss.1} parent=0 // pred_fallthru
    _
  %v26 = vld [vmem:[%s0] sm:$0xff]
  %vm27 = vcmask 48128
  %v28 = vsel %vm27, %v26, -inf
  %29 = vmax.xlane.f32.xlu0 %v28
  %v30 = vpop.xlane.xlu0 %29
  %v31 = vsub.f32 %v26, %v30
  %v32 = vmul.f32 %v31, 1.442695
  %v33 = vpow.pop %v32
  %v34 = vsel %vm27, %v33, 0.0
  %35 = vadd.xlane.f32.xlu0 %v34
  %v36 = vpop.xlane.xlu0 %35
  %v37 = vlog2.pop %v36
  %v38 = vmul.f32 %v37, 0.6931472
  %v39 = vadd.f32 %v30, %v38
  %v40 = vlaneseq
  %v41 = vand.u32 %v40, 127
  %v42 = vld [vmem:[%s1] sm:$0xff]
  %43 = vset.pattern.permute.xlu0 0
  %44 = vperm.xlu0 %43, %v42
  %v45 = vpop.permute.xlu0 %44
  %vm46 = vcmp.eq.s32.totalorder %v41, %v45
  %v47 = vsel %vm46, %v26, 0.0
  %v48 = vsel %vm27, %v47, 0.0
  %49 = vadd.xlane.f32.xlu0 %v48
  %v50 = vpop.xlane.xlu0 %49
  %v51 = vsub.f32 %v39, %v50
  %v52 = vld [vmem:[%s4] sm:$0xff]
  %v53 = vld [vmem:[%s5] sm:$0xff]
  %v54 = vld [vmem:[%s5 + $0x8] sm:$0xff]
  %v55 = vld [vmem:[%s5 + $0x10] sm:$0xff]
  %v56 = vld [vmem:[%s5 + $0x18] sm:$0xff]
  %vm57 = vcmask 261120
  %v59 = vsel %vm57, %v52, 0
  %61 = vmatprep.subr.mxu0 0.0
  %62 = vmatpush1.msra.mxu0 %v53
  %63 = vmatprep.subr.mxu0 0.0
  %64 = vmatpush1.msra.mxu0 %v54
  %65 = vmatprep.subr.mxu0 0.0
  %66 = vmatpush1.msra.mxu0 %v55
  %67 = vmatprep.subr.mxu0 0.0
  %68 = vmatpush1.msra.mxu0 %v56
  %69 = vmatprep.subr.mxu0 0.0
  %70 = vmatpush1.msra.mxu0 0.0
  %71 = vmatprep.subr.mxu0 0.0
  %72 = vmatpush1.msra.mxu0 0.0
  %73 = vmatprep.subr.mxu0 0.0
  %74 = vmatpush1.msra.mxu0 0.0
  %75 = vmatprep.subr.mxu0 0.0
  %76 = vmatpush1.msra.mxu0 0.0
  %77 = vmatprep.subr.mxu0 0.0
  %78 = vmatpush1.msra.mxu0 0.0
  %79 = vmatprep.subr.mxu0 0.0
  %80 = vmatpush1.msra.mxu0 0.0
  %81 = vmatprep.subr.mxu0 0.0
  %82 = vmatpush1.msra.mxu0 0.0
  %83 = vmatprep.subr.mxu0 0.0
  %84 = vmatpush1.msra.mxu0 0.0
  %85 = vmatprep.subr.mxu0 0.0
  %86 = vmatpush1.msra.mxu0 0.0
  %87 = vmatprep.subr.mxu0 0.0
  %88 = vmatpush1.msra.mxu0 0.0
  %89 = vmatprep.subr.mxu0 0.0
  %90 = vmatpush1.msra.mxu0 0.0
  %91 = vmatprep.subr.mxu0 0.0
  %92 = vmatpush1.msra.mxu0 0.0
  %93 = vmatprep.subr.mxu0 0.0
  %94 = vmatpush1.msra.mxu0 0.0
  %95 = vmatprep.subr.mxu0 0.0
  %96 = vmatpush1.msra.mxu0 0.0
  %97 = vmatprep.subr.mxu0 0.0
  %98 = vmatpush1.msra.mxu0 0.0
  %99 = vmatprep.subr.mxu0 0.0
  %100 = vmatpush1.msra.mxu0 0.0
  %101 = vmatprep.subr.mxu0 0.0
  %102 = vmatpush1.msra.mxu0 0.0
  %103 = vmatprep.subr.mxu0 0.0
  %104 = vmatpush1.msra.mxu0 0.0
  %105 = vmatprep.subr.mxu0 0.0
  %106 = vmatpush1.msra.mxu0 0.0
  %107 = vmatprep.subr.mxu0 0.0
  %108 = vmatpush1.msra.mxu0 0.0
  %109 = vmatprep.subr.mxu0 0.0
  %110 = vmatpush1.msra.mxu0 0.0
  %111 = vmatprep.subr.mxu0 0.0
  %112 = vmatpush1.msra.mxu0 0.0
  %113 = vmatprep.subr.mxu0 0.0
  %114 = vmatpush1.msra.mxu0 0.0
  %115 = vmatprep.subr.mxu0 0.0
  %116 = vmatpush1.msra.mxu0 0.0
  %117 = vmatprep.subr.mxu0 0.0
  %118 = vmatpush1.msra.mxu0 0.0
  %119 = vmatprep.subr.mxu0 0.0
  %120 = vmatpush1.msra.mxu0 0.0
  %121 = vmatprep.subr.mxu0 0.0
  %122 = vmatpush1.msra.mxu0 0.0
  %123 = vmatprep.subr.mxu0 0.0
  %124 = vmatpush1.msra.mxu0 0.0
  %125 = vmatprep.mubr.f32.mxu0 0.0
  %126 = vmatmul.mubr.f32.gmra.mrb[0].mxu0 %v59
  %v127 = vpop.f32.mrb[0].mxu0
  %v128 = vadd.f32 0.0, %v127
  %v129 = vpop.f32.mrb[0].mxu0
  %130 = vdwg.mxu0
  %v131 = vmul.f32 %v52, %v52
  %v132 = vsel %vm57, %v131, 0.0
  %133 = vadd.xlane.f32.xlu0 %v132
  %v134 = vpop.xlane.xlu0 %133
  %v135 = vmax.f32 %v134, 1e-16
  %v136 = vrsqrt.pop %v135
  %v137 = vld [vmem:[%s6] sm:$0xff]
  %v138 = vmul.f32 %v128, %v136
  %v139 = vlaneseq
  %v140 = vshrl.u32 %v139, 7
  %v141 = vsub.s32 1, %v140
  %v142 = vrot.slane %v137, %v141
  %v143 = vmul.f32 %v138, %v142
  %v144 = vlaneseq
  %v145 = vshrl.u32 %v144, 7
  %v146 = vsub.s32 0, %v145
  %v147 = vrot.slane %v137, %v146
  %v148 = vadd.f32 %v134, %v147
  %v149 = vmul.f32 %v128, 2.0
  %v150 = vsub.f32 %v148, %v149
  %v151 = vmax.f32 %v150, 0.0
  %v152 = vrsqrt.pop %v151
  %v153 = vmul.f32 %v151, %v152
  %vm154 = vcmp.eq.f32.partialorder %v151, inf
  %v155 = vsel %vm154, %v151, %v153
  %vm156 = vcmp.eq.f32.partialorder %v151, 0.0
  %v157 = vand.u32 %v151, 2147483648
  %v158 = vsel %vm156, %v157, %v155
  %vm159 = vcmp.lt.s32.totalorder %v41, 4
  %vm160 = vcmp.ge.s32.totalorder %v41, 4
  %vm161 = vcmp.lt.s32.totalorder %v41, 8
  %vm162 = vmand %vm160, %vm161
  %v163 = vmul.f32 %v143, 14.285714
  %v164 = vmul.f32 %v163, 1.442695
  %v165 = vpow.pop %v164
  %v166 = vsel %vm159, %v165, 0.0
  %v167 = vsel %vm162, %v165, 0.0
  %168 = vadd.xlane.f32.xlu0 %v166
  %v169 = vpop.xlane.xlu0 %168
  %v170 = vrcp.pop %v169
  %171 = vadd.xlane.f32.xlu0 %v167
  %v172 = vpop.xlane.xlu0 %171
  %v173 = vrcp.pop %v172
  %v174 = vmul.f32 %v158, %v166
  %175 = vadd.xlane.f32.xlu0 %v174
  %v176 = vpop.xlane.xlu0 %175
  %v177 = vmul.f32 %v176, %v170
  %v178 = vsub.f32 1.0, %v143
  %v179 = vmul.f32 %v178, %v167
  %180 = vadd.xlane.f32.xlu0 %v179
  %v181 = vpop.xlane.xlu0 %180
  %v182 = vmul.f32 %v181, %v173
  %s183 = smul.u32 0, 8
  %v184 = vlaneseq
  %v185 = vshrl.u32 %v184, 7
  %v186 = vstv %s183
  %v187 = vadd.s32 %v186, %v185
  %vm188 = vcmp.lt.s32.totalorder %v187, 8
  %v189 = vld [vmem:[%s2] sm:$0xff]
  %vm190 = vcmp.ne.s32.totalorder %v189, 0
  %vm191 = vmand %vm190, %vm188
  %vm192 = vcmp.eq.s32.totalorder %v189, 0
  %vm193 = vmand %vm192, %vm188
  %v194 = vld [vmem:[%s3] sm:$0xff]
  %vm195 = vcmp.ne.s32.totalorder %v194, 0
  %vm196 = vmand %vm195, %vm188
  %v197 = vsel %vm191, %v51, 0.0
  %vm198 = vcmask 7168
  %v199 = vsel %vm198, %v197, 0.0
  %v200 = vrot.slane %v199, 4
  %v201 = vadd.f32 %v199, %v200
  %v202 = vrot.slane %v201, 2
  %v203 = vadd.f32 %v201, %v202
  %v204 = vrot.slane %v203, 1
  %v205 = vadd.f32 %v203, %v204
  %v206 = vsel %vm193, %v177, 0.0
  %v207 = vsel %vm198, %v206, 0.0
  %v208 = vrot.slane %v207, 4
  %v209 = vadd.f32 %v207, %v208
  %v210 = vrot.slane %v209, 2
  %v211 = vadd.f32 %v209, %v210
  %v212 = vrot.slane %v211, 1
  %v213 = vadd.f32 %v211, %v212
  %v214 = vsel %vm196, %v182, 0.0
  %v215 = vsel %vm198, %v214, 0.0
  %v216 = vrot.slane %v215, 4
  %v217 = vadd.f32 %v215, %v216
  %v218 = vrot.slane %v217, 2
  %v219 = vadd.f32 %v217, %v218
  %v220 = vrot.slane %v219, 1
  %v221 = vadd.f32 %v219, %v220
  %vm222 = vcmp.eq.s32.totalorder %v41, 0
  %224 = vset.pattern.permute.xlu0 0
  %225 = vperm.xlu0 %224, %v205
  %v226 = vpop.permute.xlu0 %225
  %v228 = vsel %vm222, %v226, 0.0
  %vm229 = vcmp.eq.s32.totalorder %v41, 1
  %231 = vset.pattern.permute.xlu0 0
  %232 = vperm.xlu0 %231, %v213
  %v233 = vpop.permute.xlu0 %232
  %v235 = vsel %vm229, %v233, 0.0
  %v236 = vadd.f32 %v228, %v235
  %vm237 = vcmp.eq.s32.totalorder %v41, 2
  %239 = vset.pattern.permute.xlu0 0
  %240 = vperm.xlu0 %239, %v221
  %v241 = vpop.permute.xlu0 %240
  %v243 = vsel %vm237, %v241, 0.0
  %v244 = vadd.f32 %v236, %v243
  %245 = vst [vmem:[%s7] sm:$0xff] %v244
  // Predicated region
  $region30: #{dpn_loss.1} parent=0 // pred_check
    _
  $region31: #{dpn_loss.1} parent=0 // pred_check_branch
    %247 = sbr.rel (0) target = $region33
  $region32: #{dpn_loss.1} parent=0 // pred_region
    _
  $region33: #{dpn_loss.1} parent=0 // pred_fallthru
    _
  // Predicated region
  $region34: #{dpn_loss.1} parent=0 // pred_check
    _
  $region35: #{dpn_loss.1} parent=0 // pred_check_branch
    %249 = sbr.rel (0) target = $region37
  $region36: #{dpn_loss.1} parent=0 // pred_region
    _
  $region37: #{dpn_loss.1} parent=0 // pred_fallthru
    _

</llo_original>
